<compile_context>
chip_gen: v5e
topology: v5e:2x2
jax: 0.10.0
libtpu: 0.0.40
codegen_flags: <defaults>
</compile_context>

<pallas_src>
import jax
import jax.numpy as jnp
from jax.experimental import pallas as pl
from jax.experimental.pallas import tpu as pltpu


def _round_up(x, m):
    return ((x + m - 1) // m) * m


def _lane_pad(d):
    # Hard MXU/vreg constraint is 128 lanes.  Pad to a 256 multiple only when the
    # dim is already >= 256 so the 256-wide MXU on v6e/v7x stays full without adding
    # DMA bytes to tiny dims (128 already matches v5e's 4x128^2 MXU).
    if d >= 256:
        return _round_up(d, 256)
    return _round_up(max(d, 128), 128)


def _predict_step_kernel(x_ref, w1_ref, b1_ref, w2_ref, b2_ref, o_ref):
    # Layer 1: bf16 MXU matmul, f32 accumulation; bias add + ReLU on the f32
    # accumulator run on the otherwise-idle VPU (v5e-safe: no bf16 VPU needed).
    h = jnp.dot(x_ref[...], w1_ref[...], preferred_element_type=jnp.float32)
    h = jnp.maximum(h + b1_ref[...], 0.0)
    # Layer 2: recast to bf16 for the MXU, accumulate f32, add b2, store.
    y = jnp.dot(h.astype(jnp.bfloat16), w2_ref[...],
                preferred_element_type=jnp.float32)
    o_ref[...] = (y + b2_ref[...]).astype(o_ref.dtype)


def make_fake_module_forward(w1, b1, w2, b2, *, batch_tile=128):
    """Builds FakeModule.forward(x) == module.predict_step(x, 0).

    Padded bf16 weight slabs and f32 bias rows are computed once here (they
    depend only on the parameters) and closed over, so per-call wrapper work is
    a single bf16 pad of x and a slice of the output.
    """
    D_in, H = w1.shape
    O = w2.shape[1]

    K_pad = _lane_pad(D_in)
    H_pad = _lane_pad(H)
    N_pad = _lane_pad(O)

    # Built once, reused on every forward call.
    w1_p = jnp.pad(w1.astype(jnp.bfloat16), ((0, K_pad - D_in), (0, H_pad - H)))
    w2_p = jnp.pad(w2.astype(jnp.bfloat16), ((0, H_pad - H), (0, N_pad - O)))
    b1_p = jnp.pad(b1.astype(jnp.float32), (0, H_pad - H)).reshape(1, H_pad)
    b2_p = jnp.pad(b2.astype(jnp.float32), (0, N_pad - O)).reshape(1, N_pad)

    def forward(x):
        B = x.shape[0]
        B_pad = _round_up(max(B, 16), 16)          # bf16 sublane packing = 16 rows
        if B_pad >= batch_tile:
            tb = batch_tile                        # keep per-tile h small (no spills)
            B_pad = _round_up(B_pad, tb)
        else:
            tb = B_pad
        grid = (B_pad // tb,)

        # Single bf16 pad per call (x is the only per-call operand).
        x_p = jnp.pad(x.astype(jnp.bfloat16),
                      ((0, B_pad - B), (0, K_pad - D_in)))

        cost = pl.CostEstimate(
            flops=2 * B_pad * (K_pad * H_pad + H_pad * N_pad),
            transcendentals=0,
            bytes_accessed=(x_p.size * 2 + w1_p.size * 2 + w2_p.size * 2
                            + b1_p.size * 4 + b2_p.size * 4
                            + B_pad * N_pad * 4),
        )

        y_pad = pl.pallas_call(
            _predict_step_kernel,
            out_shape=jax.ShapeDtypeStruct((B_pad, N_pad), jnp.float32),
            grid=grid,
            in_specs=[
                pl.BlockSpec((tb, K_pad), lambda i: (i, 0)),      # x batch tile
                pl.BlockSpec((K_pad, H_pad), lambda i: (0, 0)),   # W1 (resident)
                pl.BlockSpec((1, H_pad), lambda i: (0, 0)),       # b1 row (f32)
                pl.BlockSpec((H_pad, N_pad), lambda i: (0, 0)),   # W2 (resident)
                pl.BlockSpec((1, N_pad), lambda i: (0, 0)),       # b2 row (f32)
            ],
            out_specs=pl.BlockSpec((tb, N_pad), lambda i: (i, 0)),
            compiler_params=pltpu.CompilerParams(
                dimension_semantics=("parallel",)),               # 2 TCs on v7x
            cost_estimate=cost,
        )(x_p, w1_p, b1_p, w2_p, b2_p)

        return y_pad[:B, :O].astype(x.dtype)

    return jax.jit(forward)


if __name__ == "__main__":
    # Small shapes: batch=2, in=32, hidden=32, out=16
    B, D_in, H, O = 2, 32, 32, 16

    key = jax.random.PRNGKey(0)
    kx, kw1, kb1, kw2, kb2 = jax.random.split(key, 5)

    x = jax.random.normal(kx, (B, D_in), dtype=jnp.float32)
    # Deterministic parameter init (synthetic; no checkpoint load).
    w1 = jax.random.normal(kw1, (D_in, H), dtype=jnp.float32) * 0.05
    b1 = jax.random.normal(kb1, (H,), dtype=jnp.float32) * 0.01
    w2 = jax.random.normal(kw2, (H, O), dtype=jnp.float32) * 0.05
    b2 = jax.random.normal(kb2, (O,), dtype=jnp.float32) * 0.01

    fake_module_forward = make_fake_module_forward(w1, b1, w2, b2)

    out = fake_module_forward(x)
    out = jax.block_until_ready(out)

    # Sanity check against plain-JAX f32 reference of the same predict_step.
    # Tolerance loosened slightly for bf16 MXU inputs (f32 accumulation).
    ref = jnp.maximum(x @ w1 + b1, 0.0) @ w2 + b2
    assert out.shape == (B, O)
    assert jnp.allclose(out, ref, atol=2e-2, rtol=2e-2), float(
        jnp.max(jnp.abs(out - ref)))

    print("KERNEL_OK")
</pallas_src>

<mosaic_0001>
module attributes {stable_mosaic.version = 11 : i64} {
  func.func @_predict_step_kernel(%arg0: i32, %arg1: memref<16x128xbf16, #tpu.memory_space<vmem>>, %arg2: memref<128x128xbf16, #tpu.memory_space<vmem>>, %arg3: memref<1x128xf32, #tpu.memory_space<vmem>>, %arg4: memref<128x128xbf16, #tpu.memory_space<vmem>>, %arg5: memref<1x128xf32, #tpu.memory_space<vmem>>, %arg6: memref<16x128xf32, #tpu.memory_space<vmem>>) attributes {dimension_semantics = [#tpu.dimension_semantics<parallel>], iteration_bounds = array<i64: 1>, scalar_prefetch = 0 : i64, scratch_operands = 0 : i64, tpu.core_type = #tpu.core_type<tc>, window_params = [{transform_indices = @transform_0, window_bounds = array<i64: 16, 128>}, {pipeline_mode = #tpu.pipeline_mode<synchronous>, transform_indices = @transform_1, window_bounds = array<i64: 128, 128>}, {pipeline_mode = #tpu.pipeline_mode<synchronous>, transform_indices = @transform_2, window_bounds = array<i64: 1, 128>}, {pipeline_mode = #tpu.pipeline_mode<synchronous>, transform_indices = @transform_3, window_bounds = array<i64: 128, 128>}, {pipeline_mode = #tpu.pipeline_mode<synchronous>, transform_indices = @transform_4, window_bounds = array<i64: 1, 128>}, {transform_indices = @transform_5, window_bounds = array<i64: 16, 128>}]} {
    %c0 = arith.constant 0 : index
    %c0_0 = arith.constant 0 : index
    %0 = vector.load %arg1[%c0, %c0_0] : memref<16x128xbf16, #tpu.memory_space<vmem>>, vector<16x128xbf16>
    %c0_1 = arith.constant 0 : index
    %c0_2 = arith.constant 0 : index
    %1 = vector.load %arg2[%c0_1, %c0_2] : memref<128x128xbf16, #tpu.memory_space<vmem>>, vector<128x128xbf16>
    %cst = arith.constant dense<0.000000e+00> : vector<16x128xf32>
    %2 = tpu.matmul %0, %1, %cst {dimension_numbers = #tpu.dot_dimension_numbers<[1], [0], [0], [1], [0, 0, 1, 1], [], []>} : vector<16x128xbf16>, vector<128x128xbf16>, vector<16x128xf32> -> vector<16x128xf32>
    %c0_3 = arith.constant 0 : index
    %c0_4 = arith.constant 0 : index
    %3 = vector.load %arg3[%c0_3, %c0_4] : memref<1x128xf32, #tpu.memory_space<vmem>>, vector<1x128xf32>
    %4 = vector.broadcast %3 : vector<1x128xf32> to vector<16x128xf32>
    %5 = arith.addf %2, %4 : vector<16x128xf32>
    %cst_5 = arith.constant 0.000000e+00 : f32
    %6 = vector.broadcast %cst_5 : f32 to vector<16x128xf32>
    %7 = arith.maximumf %5, %6 : vector<16x128xf32>
    %8 = arith.truncf %7 : vector<16x128xf32> to vector<16x128xbf16>
    %c0_6 = arith.constant 0 : index
    %c0_7 = arith.constant 0 : index
    %9 = vector.load %arg4[%c0_6, %c0_7] : memref<128x128xbf16, #tpu.memory_space<vmem>>, vector<128x128xbf16>
    %cst_8 = arith.constant dense<0.000000e+00> : vector<16x128xf32>
    %10 = tpu.matmul %8, %9, %cst_8 {dimension_numbers = #tpu.dot_dimension_numbers<[1], [0], [0], [1], [0, 0, 1, 1], [], []>} : vector<16x128xbf16>, vector<128x128xbf16>, vector<16x128xf32> -> vector<16x128xf32>
    %c0_9 = arith.constant 0 : index
    %c0_10 = arith.constant 0 : index
    %11 = vector.load %arg5[%c0_9, %c0_10] : memref<1x128xf32, #tpu.memory_space<vmem>>, vector<1x128xf32>
    %12 = vector.broadcast %11 : vector<1x128xf32> to vector<16x128xf32>
    %13 = arith.addf %10, %12 : vector<16x128xf32>
    %c0_11 = arith.constant 0 : index
    %c0_12 = arith.constant 0 : index
    %14 = vector.load %arg6[%c0_11, %c0_12] : memref<16x128xf32, #tpu.memory_space<vmem>>, vector<16x128xf32>
    tpu.vector_store %arg6[%c0_11, %c0_12], %13 {strides = array<i32>} : memref<16x128xf32, #tpu.memory_space<vmem>>, vector<16x128xf32>,
    return
  }
  func.func @transform_0(%arg0: i32) -> (i32, i32) {
    %c0_i32 = arith.constant 0 : i32
    %c0_i32_0 = arith.constant 0 : i32
    return %arg0, %c0_i32 : i32, i32
  }
  func.func @transform_1(%arg0: i32) -> (i32, i32) {
    %c0_i32 = arith.constant 0 : i32
    %c0_i32_0 = arith.constant 0 : i32
    %c0_i32_1 = arith.constant 0 : i32
    return %c0_i32, %c0_i32_0 : i32, i32
  }
  func.func @transform_2(%arg0: i32) -> (i32, i32) {
    %c0_i32 = arith.constant 0 : i32
    %c0_i32_0 = arith.constant 0 : i32
    %c0_i32_1 = arith.constant 0 : i32
    return %c0_i32, %c0_i32_0 : i32, i32
  }
  func.func @transform_3(%arg0: i32) -> (i32, i32) {
    %c0_i32 = arith.constant 0 : i32
    %c0_i32_0 = arith.constant 0 : i32
    %c0_i32_1 = arith.constant 0 : i32
    return %c0_i32, %c0_i32_0 : i32, i32
  }
  func.func @transform_4(%arg0: i32) -> (i32, i32) {
    %c0_i32 = arith.constant 0 : i32
    %c0_i32_0 = arith.constant 0 : i32
    %c0_i32_1 = arith.constant 0 : i32
    return %c0_i32, %c0_i32_0 : i32, i32
  }
  func.func @transform_5(%arg0: i32) -> (i32, i32) {
    %c0_i32 = arith.constant 0 : i32
    %c0_i32_0 = arith.constant 0 : i32
    return %arg0, %c0_i32 : i32, i32
  }
}

</mosaic_0001>

<llo_original>
// kernel: forward.1
$region0: #{forward.1}
  #allocation0 [shape = 'u32[]', space=smem, size = 0x4, offset = 0x4, fixed_abs, tag = 'smem constant byte address 0x4 - core index']
  #allocation1 [shape = 'u32[72,128]{1,0:T(1,128)}', space=vmem, size = 0x9000, scoped, tag = 'internal scratch']
  %s0 = inlined_call_operand.vmem [shape: bf16[16,128], index: 0, kind: input, shape index: {}]
  %s1 = inlined_call_operand.hbm [shape: bf16[128,128], index: 1, kind: input, shape index: {}]
  %s2 = inlined_call_operand.vmem [shape: f32[1,128], index: 2, kind: input, shape index: {}]
  %s3 = inlined_call_operand.hbm [shape: bf16[128,128], index: 3, kind: input, shape index: {}]
  %s4 = inlined_call_operand.vmem [shape: f32[1,128], index: 4, kind: input, shape index: {}]
  %s5 = inlined_call_operand.vmem [shape: f32[16,128], index: 5, kind: output, shape index: {}]
  %s6 = sld [smem:[#allocation0]]
  $region38: #{forward.1} parent=0
    _
  %s8 = ssub.s32 1, %s6
  %s9 = scalar_select 0, %s8, %s6
  $region1: #{forward.1} parent=0
    #allocation2 [shape = 'u8[32768]{0}', space=vmem, size = 0x8000, scoped, tag = 'input window, operand 1, single buffered']
    #allocation3 [shape = 's32[1]{0}', space=sflag, size = 0x4, scoped, tag = 'scoped memory for forward.1']
    #allocation4 [shape = 'u8[32768]{0}', space=vmem, size = 0x8000, scoped, tag = 'input window, operand 3, single buffered']
    #allocation5 [shape = 's32[1]{0}', space=sflag, size = 0x4, scoped, tag = 'scoped memory for forward.1']
    %10 = vsyncpa [#allocation3], 0
    %11 = vsyncpa [#allocation5], 0
    // Predicated region
    $region2: #{forward.1} parent=1 // pred_check
      _
    $region3: #{forward.1} parent=1 // pred_check_branch
      %13 = sbr.rel (0) target = $region5
    $region4: #{forward.1} parent=1 // pred_region
      _
    $region5: #{forward.1} parent=1 // pred_fallthru
      _
    // Predicated region
    $region6: #{forward.1} parent=1 // pred_check
      _
    $region7: #{forward.1} parent=1 // pred_check_branch
      %15 = sbr.rel (0) target = $region9
    $region8: #{forward.1} parent=1 // pred_region
      %17 = vsyncadd [#allocation3], 0
      %s18 = sshll.u32 %s1, 4
      %s19 = int_to_ptr.hbm [resolvable:$true] %s18
      %s20 = sshll.u32 [#allocation2], 4
      %s21 = int_to_ptr.vmem [resolvable:$true] %s20
      %26 = dma.hbm_to_vmem [thread:$0]  %s19, 1024, %s21, [#allocation3], 64, 64, 4
    $region9: #{forward.1} parent=1 // pred_fallthru
      _
    // Predicated region
    $region10: #{forward.1} parent=1 // pred_check
      _
    $region11: #{forward.1} parent=1 // pred_check_branch
      %28 = sbr.rel (0) target = $region13
    $region12: #{forward.1} parent=1 // pred_region
      _
    $region13: #{forward.1} parent=1 // pred_fallthru
      _
    // Predicated region
    $region14: #{forward.1} parent=1 // pred_check
      _
    $region15: #{forward.1} parent=1 // pred_check_branch
      %30 = sbr.rel (0) target = $region17
    $region16: #{forward.1} parent=1 // pred_region
      %32 = vsyncadd [#allocation5], 0
      %s33 = sshll.u32 %s3, 4
      %s34 = int_to_ptr.hbm [resolvable:$true] %s33
      %s35 = sshll.u32 [#allocation4], 4
      %s36 = int_to_ptr.vmem [resolvable:$true] %s35
      %41 = dma.hbm_to_vmem [thread:$0]  %s34, 1024, %s36, [#allocation5], 64, 64, 4
    $region17: #{forward.1} parent=1 // pred_fallthru
      _
    // Predicated region
    $region18: #{forward.1} parent=1 // pred_check
      _
    $region19: #{forward.1} parent=1 // pred_check_branch
      %43 = sbr.rel (0) target = $region21
    $region20: #{forward.1} parent=1 // pred_region
      _
    $region21: #{forward.1} parent=1 // pred_fallthru
      _
    // Predicated region
    $region22: #{forward.1} parent=1 // pred_check
      _
    $region23: #{forward.1} parent=1 // pred_check_branch
      %45 = sbr.rel (0) target = $region25
    $region24: #{forward.1} parent=1 // pred_region
      %47 = dma.done [#allocation3], 1024
    $region25: #{forward.1} parent=1 // pred_fallthru
      _
    // Predicated region
    $region26: #{forward.1} parent=1 // pred_check
      _
    $region27: #{forward.1} parent=1 // pred_check_branch
      %49 = sbr.rel (0) target = $region29
    $region28: #{forward.1} parent=1 // pred_region
      %51 = dma.done [#allocation5], 1024
    $region29: #{forward.1} parent=1 // pred_fallthru
      _
    %v52 = vld [vmem:[%s0] sm:$0xf]
    %v53 = vld [vmem:[%s0 + $0x4] sm:$0xf]
    %v54 = vld [vmem:[#allocation2] sm:$0xf]
    %v55 = vld [vmem:[#allocation2 + $0x4] sm:$0xf]
    %v56 = vld [vmem:[#allocation2 + $0x8] sm:$0xf]
    %v57 = vld [vmem:[#allocation2 + $0xc] sm:$0xf]
    %v58 = vld [vmem:[#allocation2 + $0x10] sm:$0xf]
    %v59 = vld [vmem:[#allocation2 + $0x14] sm:$0xf]
    %v60 = vld [vmem:[#allocation2 + $0x18] sm:$0xf]
    %v61 = vld [vmem:[#allocation2 + $0x1c] sm:$0xf]
    %v62 = vld [vmem:[#allocation2 + $0x20] sm:$0xf]
    %v63 = vld [vmem:[#allocation2 + $0x24] sm:$0xf]
    %v64 = vld [vmem:[#allocation2 + $0x28] sm:$0xf]
    %v65 = vld [vmem:[#allocation2 + $0x2c] sm:$0xf]
    %v66 = vld [vmem:[#allocation2 + $0x30] sm:$0xf]
    %v67 = vld [vmem:[#allocation2 + $0x34] sm:$0xf]
    %v68 = vld [vmem:[#allocation2 + $0x38] sm:$0xf]
    %v69 = vld [vmem:[#allocation2 + $0x3c] sm:$0xf]
    %v70 = vld [vmem:[%s2] sm:$0x1]
    %v72 = vperm.slane %v70, 0
    %v76 = vunpack.c.l.b16 %v52
    %v77 = vunpack.c.l.b16 %v53
    %v78 = vpack.c.b16 %v77, %v76
    %v96 = vunpack.c.l.b16 %v54
    %v97 = vunpack.c.l.b16 %v55
    %v98 = vunpack.c.l.b16 %v56
    %v99 = vunpack.c.l.b16 %v57
    %v100 = vunpack.c.l.b16 %v58
    %v101 = vunpack.c.l.b16 %v59
    %v102 = vunpack.c.l.b16 %v60
    %v103 = vunpack.c.l.b16 %v61
    %v104 = vunpack.c.l.b16 %v62
    %v105 = vunpack.c.l.b16 %v63
    %v106 = vunpack.c.l.b16 %v64
    %v107 = vunpack.c.l.b16 %v65
    %v108 = vunpack.c.l.b16 %v66
    %v109 = vunpack.c.l.b16 %v67
    %v110 = vunpack.c.l.b16 %v68
    %v111 = vunpack.c.l.b16 %v69
    %v112 = vpack.c.b16 %v97, %v96
    %v113 = vpack.c.b16 %v99, %v98
    %v114 = vpack.c.b16 %v101, %v100
    %v115 = vpack.c.b16 %v103, %v102
    %v116 = vpack.c.b16 %v105, %v104
    %v117 = vpack.c.b16 %v107, %v106
    %v118 = vpack.c.b16 %v109, %v108
    %v119 = vpack.c.b16 %v111, %v110
    %128 = vmatpush.bf16.msra.mxu0 %v119
    %129 = vmatpush.bf16.msra.mxu0 %v118
    %130 = vmatpush.bf16.msra.mxu0 %v117
    %131 = vmatpush.bf16.msra.mxu0 %v116
    %132 = vmatpush.bf16.msra.mxu0 %v115
    %133 = vmatpush.bf16.msra.mxu0 %v114
    %134 = vmatpush.bf16.msra.mxu0 %v113
    %135 = vmatpush.bf16.msra.mxu0 %v112
    %136 = vmatmul.bf16.gmra.mxu0 %v78
    %v137 = vpop.f32.mrf.mxu0
    %v138 = vadd.f32 %v72, %v137
    %v139 = vpop.f32.mrf.mxu0
    %v140 = vadd.f32 %v72, %v139
    %141 = vdwg.mxu0
    %v142 = vmax.f32 %v138, 0.0
    %v143 = vmax.f32 %v140, 0.0
    %v144 = vpack.c.bf16 %v143, %v142
    %v145 = vld [vmem:[#allocation4] sm:$0xf]
    %v146 = vld [vmem:[#allocation4 + $0x4] sm:$0xf]
    %v147 = vld [vmem:[#allocation4 + $0x8] sm:$0xf]
    %v148 = vld [vmem:[#allocation4 + $0xc] sm:$0xf]
    %v149 = vld [vmem:[#allocation4 + $0x10] sm:$0xf]
    %v150 = vld [vmem:[#allocation4 + $0x14] sm:$0xf]
    %v151 = vld [vmem:[#allocation4 + $0x18] sm:$0xf]
    %v152 = vld [vmem:[#allocation4 + $0x1c] sm:$0xf]
    %v153 = vld [vmem:[#allocation4 + $0x20] sm:$0xf]
    %v154 = vld [vmem:[#allocation4 + $0x24] sm:$0xf]
    %v155 = vld [vmem:[#allocation4 + $0x28] sm:$0xf]
    %v156 = vld [vmem:[#allocation4 + $0x2c] sm:$0xf]
    %v157 = vld [vmem:[#allocation4 + $0x30] sm:$0xf]
    %v158 = vld [vmem:[#allocation4 + $0x34] sm:$0xf]
    %v159 = vld [vmem:[#allocation4 + $0x38] sm:$0xf]
    %v160 = vld [vmem:[#allocation4 + $0x3c] sm:$0xf]
    %v161 = vld [vmem:[%s4] sm:$0x1]
    %v163 = vperm.slane %v161, 0
    %v181 = vunpack.c.l.b16 %v145
    %v182 = vunpack.c.l.b16 %v146
    %v183 = vunpack.c.l.b16 %v147
    %v184 = vunpack.c.l.b16 %v148
    %v185 = vunpack.c.l.b16 %v149
    %v186 = vunpack.c.l.b16 %v150
    %v187 = vunpack.c.l.b16 %v151
    %v188 = vunpack.c.l.b16 %v152
    %v189 = vunpack.c.l.b16 %v153
    %v190 = vunpack.c.l.b16 %v154
    %v191 = vunpack.c.l.b16 %v155
    %v192 = vunpack.c.l.b16 %v156
    %v193 = vunpack.c.l.b16 %v157
    %v194 = vunpack.c.l.b16 %v158
    %v195 = vunpack.c.l.b16 %v159
    %v196 = vunpack.c.l.b16 %v160
    %v197 = vpack.c.b16 %v182, %v181
    %v198 = vpack.c.b16 %v184, %v183
    %v199 = vpack.c.b16 %v186, %v185
    %v200 = vpack.c.b16 %v188, %v187
    %v201 = vpack.c.b16 %v190, %v189
    %v202 = vpack.c.b16 %v192, %v191
    %v203 = vpack.c.b16 %v194, %v193
    %v204 = vpack.c.b16 %v196, %v195
    %213 = vmatpush.bf16.msra.mxu0 %v204
    %214 = vmatpush.bf16.msra.mxu0 %v203
    %215 = vmatpush.bf16.msra.mxu0 %v202
    %216 = vmatpush.bf16.msra.mxu0 %v201
    %217 = vmatpush.bf16.msra.mxu0 %v200
    %218 = vmatpush.bf16.msra.mxu0 %v199
    %219 = vmatpush.bf16.msra.mxu0 %v198
    %220 = vmatpush.bf16.msra.mxu0 %v197
    %221 = vmatmul.bf16.gmra.mxu0 %v144
    %v222 = vpop.f32.mrf.mxu0
    %v223 = vadd.f32 %v163, %v222
    %v224 = vpop.f32.mrf.mxu0
    %v225 = vadd.f32 %v163, %v224
    %226 = vdwg.mxu0
    %227 = vst [vmem:[%s5] sm:$0xff] %v223
    %228 = vst [vmem:[%s5 + $0x8] sm:$0xff] %v225
    // Predicated region
    $region30: #{forward.1} parent=1 // pred_check
      _
    $region31: #{forward.1} parent=1 // pred_check_branch
      %230 = sbr.rel (0) target = $region33
    $region32: #{forward.1} parent=1 // pred_region
      _
    $region33: #{forward.1} parent=1 // pred_fallthru
      _
    // Predicated region
    $region34: #{forward.1} parent=1 // pred_check
      _
    $region35: #{forward.1} parent=1 // pred_check_branch
      %232 = sbr.rel (0) target = $region37
    $region36: #{forward.1} parent=1 // pred_region
      _
    $region37: #{forward.1} parent=1 // pred_fallthru
      _
    %233 = vsyncpa [#allocation3], 1
    %234 = vsyncpa [#allocation5], 1

</llo_original>
